<compile_context>
chip_gen: v7x
topology: tpu7x:2x2x1
jax: 0.10.0
libtpu: 0.0.40
codegen_flags: <defaults>
</compile_context>

<pallas_src>
import functools

import jax
import jax.numpy as jnp
from jax.experimental import pallas as pl
from jax.experimental.pallas import tpu as pltpu

_NEG = -1e30          # pad value for extra vocab lanes; exp(_NEG - m) == 0, no NaNs
_LANE = 128
_TILE_Q = 256         # token-tile quantum (MXU-friendly M dim, lane-dense stores)
_VMEM_BUDGET = 20 << 20
_VMEM_LIMIT = 32 * 1024 * 1024

# dot_general dimension numbers contracting dim 0 of both operands ("trans_a").
_T_DIMS = (((0,), (0,)), ((), ()))


def _round_up(x, m):
    return (x + m - 1) // m * m


# ---------------------------------------------------------------------------
# Kernels
# ---------------------------------------------------------------------------
def _onehot_t(idx_row, vp):
    """vrow iota and transposed one-hot (Vp, tile_n) from a lane-dense idx row."""
    tile_n = idx_row.shape[-1]
    vrow = jax.lax.broadcasted_iota(jnp.int32, (vp, tile_n), 0)
    return vrow, (vrow == idx_row).astype(jnp.float32)


def _loss_partial(logits_t, vrow, tgt_row, tile_i, n_valid):
    """Masked partial cross-entropy sum for one tile, from (Vp, tile_n) logits.

    All reductions are along the sublane (vocab) axis so the lane-dense target
    row can be used directly (no lane->sublane relayout).
    """
    tile_n = logits_t.shape[1]
    m = jnp.max(logits_t, axis=0, keepdims=True)                          # (1, tile_n)
    lse = m + jnp.log(jnp.sum(jnp.exp(logits_t - m), axis=0, keepdims=True))
    tgt_logit = jnp.sum(jnp.where(vrow == tgt_row, logits_t, 0.0),
                        axis=0, keepdims=True)                            # (1, tile_n)
    per_tok = lse - tgt_logit
    tok = jax.lax.broadcasted_iota(jnp.int32, (1, tile_n), 1) + tile_i * tile_n
    return jnp.sum(jnp.where(tok < n_valid, per_tok, 0.0))


def _logits_loss_kernel(idx_ref, tgt_ref, emb_ref, logits_ref, loss_ref, *, n_valid):
    emb = emb_ref[...]
    vrow, onehot_t = _onehot_t(idx_ref[...], emb.shape[0])
    # Lane-dense (tile_n, Vp) logits for the HBM store:  onehot_T^T @ E
    logits = jax.lax.dot_general(onehot_t, emb, _T_DIMS,
                                 preferred_element_type=jnp.float32)
    logits_ref[...] = logits.astype(logits_ref.dtype)
    # Loss math in the transposed (Vp, tile_n) domain:  E^T @ onehot_T
    logits_t = jax.lax.dot_general(emb, onehot_t, _T_DIMS,
                                   preferred_element_type=jnp.float32)
    partial = _loss_partial(logits_t, vrow, tgt_ref[...], pl.program_id(0), n_valid)
    loss_ref[...] = partial + jnp.zeros(loss_ref.shape, loss_ref.dtype)


def _loss_only_kernel(idx_ref, tgt_ref, emb_ref, loss_ref, *, n_valid):
    emb = emb_ref[...]
    vrow, onehot_t = _onehot_t(idx_ref[...], emb.shape[0])
    logits_t = jax.lax.dot_general(emb, onehot_t, _T_DIMS,
                                   preferred_element_type=jnp.float32)
    partial = _loss_partial(logits_t, vrow, tgt_ref[...], pl.program_id(0), n_valid)
    loss_ref[...] = partial + jnp.zeros(loss_ref.shape, loss_ref.dtype)


def _logits_only_kernel(idx_ref, emb_ref, logits_ref):
    emb = emb_ref[...]
    _, onehot_t = _onehot_t(idx_ref[...], emb.shape[0])
    logits = jax.lax.dot_general(onehot_t, emb, _T_DIMS,
                                 preferred_element_type=jnp.float32)
    logits_ref[...] = logits.astype(logits_ref.dtype)


# ---------------------------------------------------------------------------
# Tiling / preparation
# ---------------------------------------------------------------------------
def _choose_tile(N, vp, tile_n):
    # Big tiles amortize the ~0.35us fixed per-grid-step cost; multiples of 256
    # keep the MXU M-dim and the logits store clean on all generations.
    tile_n = max(_TILE_Q, _round_up(tile_n, _TILE_Q))
    tile_n = min(tile_n, _round_up(N, _TILE_Q))

    # Cap so double-buffered logits out + f32 (tile, Vp) intermediates + the
    # resident table stay well inside the 32 MiB scoped VMEM we request.
    def vmem_est(t):
        return (2 * t * vp + 4 * t * vp + 2 * vp * vp + 4 * t) * 4

    while tile_n > _TILE_Q and vmem_est(tile_n) > _VMEM_BUDGET:
        tile_n -= _TILE_Q

    n_pad = _round_up(N, tile_n)
    num_tiles = n_pad // tile_n

    # v7x megacore: the grid axis is "parallel" across two TensorCores; make sure
    # both get work when there is enough of it (neutral on v5e/v6e).
    if num_tiles == 1 and N > _TILE_Q:
        tile_n = max(_TILE_Q, _round_up(pl.cdiv(N, 2), _TILE_Q))
        n_pad = _round_up(N, tile_n)
        num_tiles = n_pad // tile_n
    elif num_tiles > 1 and num_tiles % 2 == 1:
        cand = max(_TILE_Q, _round_up(pl.cdiv(N, num_tiles + 1), _TILE_Q))
        cand_pad = _round_up(N, cand)
        if (cand_pad // cand) % 2 == 0 and cand_pad <= n_pad:
            tile_n, n_pad, num_tiles = cand, cand_pad, cand_pad // cand
    return tile_n, n_pad, num_tiles


def _table_spec(vp):
    """Resident, grid-invariant embedding table block."""
    if vp * vp * 4 < (1 << 20):
        # Tiny table: a duplicate double-buffer copy is noise; keep the default.
        return pl.BlockSpec((vp, vp), lambda i: (0, 0))
    try:
        # Single-buffer the invariant table so VMEM does not hold two copies
        # (matters on v7x's 64 MiB VMEM once vocab reaches ~1-4K).
        return pl.BlockSpec((vp, vp), lambda i: (0, 0),
                            pipeline_mode=pl.Buffered(buffer_count=1))
    except Exception:  # pragma: no cover - fallback if pipeline_mode unsupported
        return pl.BlockSpec((vp, vp), lambda i: (0, 0))


def _prepare(idx, emb_table, tile_n, targets=None):
    B, T = idx.shape
    V = emb_table.shape[0]
    N = B * T

    vp = _round_up(max(V, _LANE), _LANE)
    if vp >= 512:           # only pay extra padding for the 256-wide MXU once vocab is big
        vp = _round_up(vp, 256)
    tile_n, n_pad, num_tiles = _choose_tile(N, vp, tile_n)

    # Lane-dense token blocks: (num_tiles, 1, tile_n) int32.
    idx_t = jnp.pad(idx.reshape(-1).astype(jnp.int32), (0, n_pad - N))
    idx_t = idx_t.reshape(num_tiles, 1, tile_n)
    tgt_t = None
    if targets is not None:
        tgt_t = jnp.pad(targets.reshape(-1).astype(jnp.int32), (0, n_pad - N))
        tgt_t = tgt_t.reshape(num_tiles, 1, tile_n)

    # Padded vocab *columns* hold _NEG so logsumexp ignores them; padded *rows*
    # are never selected (idx < V) and are zero so 0*0 one-hot terms stay clean.
    emb = emb_table.astype(jnp.float32)
    emb = jnp.pad(emb, ((0, vp - V), (0, 0)))
    emb = jnp.pad(emb, ((0, 0), (0, vp - V)), constant_values=_NEG)
    return idx_t, tgt_t, emb, N, V, vp, tile_n, n_pad, num_tiles


# ---------------------------------------------------------------------------
# Wrappers
# ---------------------------------------------------------------------------
def bigram_forward(idx, targets, emb_table, *, tile_n=2048,
                   logits_dtype=jnp.float32, pad_out=False):
    """Forward pass of BigramLanguageModel.

    With targets:     ((B*T, V) logits, scalar mean cross-entropy)  [PyTorch semantics]
    With targets=None: ((B, T, V) logits, None)
    pad_out=True returns the (n_pad, Vp) padded logits with no post-kernel slice
    copy (lanes >= V hold -1e30, rows >= B*T are padding) - use this when a fused
    consumer can handle the padded contract; the slice is otherwise a full extra
    HBM round trip on a writeback-bound tensor.
    logits_dtype=jnp.bfloat16 halves the dominant HBM stream (recommended on v5e).
    """
    B, T = idx.shape
    (idx_t, tgt_t, emb, N, V, vp,
     tile_n, n_pad, num_tiles) = _prepare(idx, emb_table, tile_n, targets)

    grid = (num_tiles,)
    tok_spec = pl.BlockSpec((None, 1, tile_n), lambda i: (i, 0, 0))
    emb_spec = _table_spec(vp)
    logits_spec = pl.BlockSpec((tile_n, vp), lambda i: (i, 0))
    loss_spec = pl.BlockSpec((None, 1, _LANE), lambda i: (i, 0, 0))
    cparams = pltpu.CompilerParams(dimension_semantics=("parallel",),
                                   vmem_limit_bytes=_VMEM_LIMIT)

    if targets is None:
        logits_pad = pl.pallas_call(
            _logits_only_kernel,
            grid=grid,
            in_specs=[tok_spec, emb_spec],
            out_specs=logits_spec,
            out_shape=jax.ShapeDtypeStruct((n_pad, vp), logits_dtype),
            compiler_params=cparams,
        )(idx_t, emb)
        if pad_out:
            return logits_pad, None
        return logits_pad[:N, :V].reshape(B, T, V), None

    logits_pad, loss_parts = pl.pallas_call(
        functools.partial(_logits_loss_kernel, n_valid=N),
        grid=grid,
        in_specs=[tok_spec, tok_spec, emb_spec],
        out_specs=(logits_spec, loss_spec),
        out_shape=(jax.ShapeDtypeStruct((n_pad, vp), logits_dtype),
                   jax.ShapeDtypeStruct((num_tiles, 1, _LANE), jnp.float32)),
        compiler_params=cparams,
    )(idx_t, tgt_t, emb)

    loss = jnp.sum(loss_parts[:, 0, 0]) / N
    if pad_out:
        return logits_pad, loss
    return logits_pad[:N, :V], loss


def bigram_loss(idx, targets, emb_table, *, tile_n=2048):
    """Training-path loss only: skips the logits HBM writeback entirely."""
    (idx_t, tgt_t, emb, N, _, vp,
     tile_n, _, num_tiles) = _prepare(idx, emb_table, tile_n, targets)

    tok_spec = pl.BlockSpec((None, 1, tile_n), lambda i: (i, 0, 0))
    loss_parts = pl.pallas_call(
        functools.partial(_loss_only_kernel, n_valid=N),
        grid=(num_tiles,),
        in_specs=[tok_spec, tok_spec, _table_spec(vp)],
        out_specs=pl.BlockSpec((None, 1, _LANE), lambda i: (i, 0, 0)),
        out_shape=jax.ShapeDtypeStruct((num_tiles, 1, _LANE), jnp.float32),
        compiler_params=pltpu.CompilerParams(dimension_semantics=("parallel",),
                                             vmem_limit_bytes=_VMEM_LIMIT),
    )(idx_t, tgt_t, emb)
    return jnp.sum(loss_parts[:, 0, 0]) / N


def bigram_forward_ref(idx, targets, emb_table):
    """Pure-JAX reference for correctness checking."""
    B, T = idx.shape
    logits = emb_table[idx].reshape(B * T, -1)
    tgt = targets.reshape(B * T)
    lse = jax.nn.logsumexp(logits, axis=-1)
    tgt_logit = jnp.take_along_axis(logits, tgt[:, None], axis=-1)[:, 0]
    return logits, jnp.mean(lse - tgt_logit)


if __name__ == "__main__":
    vocab_size = 65   # e.g. tiny-shakespeare character vocab

    key = jax.random.PRNGKey(0)
    k_emb, k_idx, k_tgt, k_idx2, k_tgt2 = jax.random.split(key, 5)

    # nn.Embedding default init ~ N(0, 1)
    emb_table = jax.random.normal(k_emb, (vocab_size, vocab_size), dtype=jnp.float32)

    # --- small shapes straight from the module (batch=2, block_size=8) -------
    B, T = 2, 8
    idx = jax.random.randint(k_idx, (B, T), 0, vocab_size, dtype=jnp.int32)
    targets = jax.random.randint(k_tgt, (B, T), 0, vocab_size, dtype=jnp.int32)

    logits, loss = bigram_forward(idx, targets, emb_table)
    logits, loss = jax.block_until_ready((logits, loss))
    logits_ref, loss_ref = bigram_forward_ref(idx, targets, emb_table)
    assert logits.shape == (B * T, vocab_size)
    assert jnp.allclose(logits, logits_ref, atol=1e-5, rtol=1e-5)
    assert jnp.allclose(loss, loss_ref, atol=1e-5, rtol=1e-5)

    # loss-only training path (skips the logits HBM writeback entirely)
    loss2 = jax.block_until_ready(bigram_loss(idx, targets, emb_table))
    assert jnp.allclose(loss2, loss_ref, atol=1e-5, rtol=1e-5)

    # inference path (targets=None) -> (B, T, V) logits, loss None
    logits3, loss3 = bigram_forward(idx, None, emb_table)
    logits3 = jax.block_until_ready(logits3)
    assert loss3 is None
    assert jnp.allclose(logits3.reshape(B * T, vocab_size), logits_ref,
                        atol=1e-5, rtol=1e-5)

    # padded-output contract: no post-kernel slice copy; lanes >= V hold -1e30
    logits4, loss4 = bigram_forward(idx, targets, emb_table, pad_out=True)
    logits4, loss4 = jax.block_until_ready((logits4, loss4))
    assert jnp.allclose(logits4[:B * T, :vocab_size], logits_ref, atol=1e-5, rtol=1e-5)
    assert jnp.allclose(loss4, loss_ref, atol=1e-5, rtol=1e-5)

    # --- second config: multi-tile grid, row masking, megacore split ---------
    B2, T2 = 3, 256
    idx2 = jax.random.randint(k_idx2, (B2, T2), 0, vocab_size, dtype=jnp.int32)
    tgt2 = jax.random.randint(k_tgt2, (B2, T2), 0, vocab_size, dtype=jnp.int32)
    l2, ls2 = bigram_forward(idx2, tgt2, emb_table)
    l2, ls2 = jax.block_until_ready((l2, ls2))
    l2_ref, ls2_ref = bigram_forward_ref(idx2, tgt2, emb_table)
    assert jnp.allclose(l2, l2_ref, atol=1e-5, rtol=1e-5)
    assert jnp.allclose(ls2, ls2_ref, atol=1e-5, rtol=1e-5)
    ls2_only = jax.block_until_ready(bigram_loss(idx2, tgt2, emb_table))
    assert jnp.allclose(ls2_only, ls2_ref, atol=1e-5, rtol=1e-5)

    # TODO(synk): the autoregressive `generate` loop (torch.multinomial sampling)
    # is host-side control flow; build it on the targets=None path with
    # jax.random.categorical — not implemented as a kernel.
    print("KERNEL_OK")
</pallas_src>

<mosaic_0001>
module attributes {stable_mosaic.version = 11 : i64} {
  func.func @_logits_loss_kernel(%arg0: i32, %arg1: memref<1x1x256xi32, #tpu.memory_space<vmem>>, %arg2: memref<1x1x256xi32, #tpu.memory_space<vmem>>, %arg3: memref<128x128xf32, #tpu.memory_space<vmem>>, %arg4: memref<256x128xf32, #tpu.memory_space<vmem>>, %arg5: memref<1x1x128xf32, #tpu.memory_space<vmem>>) attributes {dimension_semantics = [#tpu.dimension_semantics<parallel>], iteration_bounds = array<i64: 1>, scalar_prefetch = 0 : i64, scratch_operands = 0 : i64, tpu.core_type = #tpu.core_type<tc>, window_params = [{transform_indices = @transform_0, window_bounds = array<i64: 1, 1, 256>}, {transform_indices = @transform_1, window_bounds = array<i64: 1, 1, 256>}, {pipeline_mode = #tpu.pipeline_mode<synchronous>, transform_indices = @transform_2, window_bounds = array<i64: 128, 128>}, {transform_indices = @transform_3, window_bounds = array<i64: 256, 128>}, {transform_indices = @transform_4, window_bounds = array<i64: 1, 1, 128>}]} {
    %c0 = arith.constant 0 : index
    %c0_0 = arith.constant 0 : index
    %0 = vector.load %arg3[%c0, %c0_0] : memref<128x128xf32, #tpu.memory_space<vmem>>, vector<128x128xf32>
    %c0_1 = arith.constant 0 : index
    %c0_2 = arith.constant 0 : index
    %c0_3 = arith.constant 0 : index
    %1 = vector.load %arg1[%c0_1, %c0_2, %c0_3] : memref<1x1x256xi32, #tpu.memory_space<vmem>>, vector<1x1x256xi32>
    %2 = vector.shape_cast %1 : vector<1x1x256xi32> to vector<1x256xi32>
    %3 = tpu.iota {dimensions = array<i32: 0>} : vector<128x256xi32>
    %4 = vector.broadcast %2 : vector<1x256xi32> to vector<128x256xi32>
    %5 = arith.cmpi eq, %3, %4 : vector<128x256xi32>
    %6 = arith.extui %5 : vector<128x256xi1> to vector<128x256xi32>
    %7 = arith.sitofp %6 : vector<128x256xi32> to vector<128x256xf32>
    %cst = arith.constant dense<0.000000e+00> : vector<256x128xf32>
    %8 = tpu.matmul %7, %0, %cst {dimension_numbers = #tpu.dot_dimension_numbers<[0], [0], [1], [1], [0, 1, 1, 1], [], []>} : vector<128x256xf32>, vector<128x128xf32>, vector<256x128xf32> -> vector<256x128xf32>
    %c0_4 = arith.constant 0 : index
    %c0_5 = arith.constant 0 : index
    %9 = vector.load %arg4[%c0_4, %c0_5] : memref<256x128xf32, #tpu.memory_space<vmem>>, vector<256x128xf32>
    tpu.vector_store %arg4[%c0_4, %c0_5], %8 {strides = array<i32>} : memref<256x128xf32, #tpu.memory_space<vmem>>, vector<256x128xf32>,
    %cst_6 = arith.constant dense<0.000000e+00> : vector<128x256xf32>
    %10 = tpu.matmul %0, %7, %cst_6 {dimension_numbers = #tpu.dot_dimension_numbers<[0], [0], [1], [1], [0, 1, 1, 1], [], []>} : vector<128x128xf32>, vector<128x256xf32>, vector<128x256xf32> -> vector<128x256xf32>
    %c0_7 = arith.constant 0 : index
    %c0_8 = arith.constant 0 : index
    %c0_9 = arith.constant 0 : index
    %11 = vector.load %arg2[%c0_7, %c0_8, %c0_9] : memref<1x1x256xi32, #tpu.memory_space<vmem>>, vector<1x1x256xi32>
    %12 = vector.shape_cast %11 : vector<1x1x256xi32> to vector<1x256xi32>
    %cst_10 = arith.constant dense<0xFF800000> : vector<256xf32>
    %13 = vector.multi_reduction <maximumf>, %10, %cst_10 [0] : vector<128x256xf32> to vector<256xf32>
    %14 = vector.shape_cast %13 : vector<256xf32> to vector<1x256xf32>
    %15 = vector.broadcast %14 : vector<1x256xf32> to vector<128x256xf32>
    %16 = arith.subf %10, %15 : vector<128x256xf32>
    %17 = math.exp %16 : vector<128x256xf32>
    %cst_11 = arith.constant dense<0.000000e+00> : vector<256xf32>
    %18 = vector.multi_reduction <add>, %17, %cst_11 [0] : vector<128x256xf32> to vector<256xf32>
    %19 = vector.shape_cast %18 : vector<256xf32> to vector<1x256xf32>
    %20 = math.log %19 : vector<1x256xf32>
    %21 = arith.addf %14, %20 : vector<1x256xf32>
    %22 = vector.broadcast %12 : vector<1x256xi32> to vector<128x256xi32>
    %23 = arith.cmpi eq, %3, %22 : vector<128x256xi32>
    %cst_12 = arith.constant 0.000000e+00 : f32
    %24 = vector.broadcast %cst_12 : f32 to vector<128x256xf32>
    %25 = arith.select %23, %10, %24 : vector<128x256xi1>, vector<128x256xf32>
    %cst_13 = arith.constant dense<0.000000e+00> : vector<256xf32>
    %26 = vector.multi_reduction <add>, %25, %cst_13 [0] : vector<128x256xf32> to vector<256xf32>
    %27 = vector.shape_cast %26 : vector<256xf32> to vector<1x256xf32>
    %28 = arith.subf %21, %27 : vector<1x256xf32>
    %29 = tpu.iota {dimensions = array<i32: 1>} : vector<1x256xi32>
    %c256_i32 = arith.constant 256 : i32
    %30 = arith.muli %arg0, %c256_i32 : i32
    %31 = vector.broadcast %30 : i32 to vector<1x256xi32>
    %32 = arith.addi %29, %31 : vector<1x256xi32>
    %c16_i32 = arith.constant 16 : i32
    %33 = vector.broadcast %c16_i32 : i32 to vector<1x256xi32>
    %34 = arith.cmpi slt, %32, %33 : vector<1x256xi32>
    %cst_14 = arith.constant 0.000000e+00 : f32
    %35 = vector.broadcast %cst_14 : f32 to vector<1x256xf32>
    %36 = arith.select %34, %28, %35 : vector<1x256xi1>, vector<1x256xf32>
    %37 = vector.shape_cast %36 : vector<1x256xf32> to vector<1x1x256xf32>
    %cst_15 = arith.constant dense<0.000000e+00> : vector<1xf32>
    %38 = vector.multi_reduction <add>, %37, %cst_15 [1, 2] : vector<1x1x256xf32> to vector<1xf32>
    %39 = vector.shape_cast %38 : vector<1xf32> to vector<1x1x1xf32>
    %40 = vector.extract %39[0, 0, 0] : f32 from vector<1x1x1xf32>
    %cst_16 = arith.constant 0.000000e+00 : f32
    %41 = vector.broadcast %cst_16 : f32 to vector<1x128xf32>
    %42 = vector.broadcast %40 : f32 to vector<1x128xf32>
    %43 = arith.addf %42, %41 : vector<1x128xf32>
    %c0_17 = arith.constant 0 : index
    %c0_18 = arith.constant 0 : index
    %c0_19 = arith.constant 0 : index
    %44 = vector.load %arg5[%c0_17, %c0_18, %c0_19] : memref<1x1x128xf32, #tpu.memory_space<vmem>>, vector<1x1x128xf32>
    %45 = vector.shape_cast %44 : vector<1x1x128xf32> to vector<1x128xf32>
    %46 = vector.shape_cast %43 : vector<1x128xf32> to vector<1x1x128xf32>
    tpu.vector_store %arg5[%c0_17, %c0_18, %c0_19], %46 {strides = array<i32>} : memref<1x1x128xf32, #tpu.memory_space<vmem>>, vector<1x1x128xf32>,
    return
  }
  func.func @transform_0(%arg0: i32) -> (i32, i32, i32) {
    %c0_i32 = arith.constant 0 : i32
    %c0_i32_0 = arith.constant 0 : i32
    %c0_i32_1 = arith.constant 0 : i32
    return %arg0, %c0_i32, %c0_i32_0 : i32, i32, i32
  }
  func.func @transform_1(%arg0: i32) -> (i32, i32, i32) {
    %c0_i32 = arith.constant 0 : i32
    %c0_i32_0 = arith.constant 0 : i32
    %c0_i32_1 = arith.constant 0 : i32
    return %arg0, %c0_i32, %c0_i32_0 : i32, i32, i32
  }
  func.func @transform_2(%arg0: i32) -> (i32, i32) {
    %c0_i32 = arith.constant 0 : i32
    %c0_i32_0 = arith.constant 0 : i32
    %c0_i32_1 = arith.constant 0 : i32
    return %c0_i32, %c0_i32_0 : i32, i32
  }
  func.func @transform_3(%arg0: i32) -> (i32, i32) {
    %c0_i32 = arith.constant 0 : i32
    %c0_i32_0 = arith.constant 0 : i32
    return %arg0, %c0_i32 : i32, i32
  }
  func.func @transform_4(%arg0: i32) -> (i32, i32, i32) {
    %c0_i32 = arith.constant 0 : i32
    %c0_i32_0 = arith.constant 0 : i32
    %c0_i32_1 = arith.constant 0 : i32
    return %arg0, %c0_i32, %c0_i32_0 : i32, i32, i32
  }
}

</mosaic_0001>

<llo_original>
// kernel: tpu_custom_call.1
$region0: #{tpu_custom_call.1}
  #allocation0 [shape = 'u32[]', space=smem, size = 0x4, offset = 0x4, fixed_abs, tag = 'smem constant byte address 0x4 - core index']
  #allocation1 [shape = 'u32[144,128]{1,0:T(1,128)}', space=vmem, size = 0x12000, scoped, tag = 'internal scratch']
  %s0 = inlined_call_operand.hbm [shape: s32[1,1,256], index: 0, kind: input, shape index: {}]
  %s1 = inlined_call_operand.vmem [shape: s32[1,1,256], index: 1, kind: input, shape index: {}]
  %s2 = inlined_call_operand.hbm [shape: f32[128,128], index: 2, kind: input, shape index: {}]
  %s3 = inlined_call_operand.hbm [shape: f32[256,128], index: 3, kind: output, shape index: {0}]
  %s4 = inlined_call_operand.hbm [shape: f32[1,1,128], index: 4, kind: output, shape index: {1}]
  %5 = xla_tuple %s3, %s4
  %s6 = sld [smem:[#allocation0]]
  $region38: #{tpu_custom_call.1} parent=0
    _
  %s8 = ssub.s32 1, %s6
  %s9 = scalar_select 0, %s8, %s6
  $region1: #{tpu_custom_call.1} parent=0
    #allocation2 [shape = 'u8[1024]{0}', space=vmem, size = 0x400, scoped, tag = 'input window, operand 0, single buffered']
    #allocation3 [shape = 's32[1]{0}', space=sflag, size = 0x4, scoped, tag = 'scoped memory for tpu_custom_call.1']
    #allocation4 [shape = 's32[1]{0}', space=sflag, size = 0x4, scoped, tag = 'scoped memory for tpu_custom_call.1']
    #allocation5 [shape = 'u8[65536]{0}', space=vmem, size = 0x10000, scoped, tag = 'input window, operand 2, single buffered']
    #allocation6 [shape = 's32[1]{0}', space=sflag, size = 0x4, scoped, tag = 'scoped memory for tpu_custom_call.1']
    #allocation7 [shape = 'u8[131072]{0}', space=vmem, size = 0x20000, scoped, tag = 'output window, operand 0, single buffered']
    #allocation8 [shape = 'u8[512]{0}', space=vmem, size = 0x400, scoped, tag = 'output window, operand 1, single buffered']
    #allocation9 [shape = 's32[1]{0}', space=sflag, size = 0x4, scoped, tag = 'scoped memory for tpu_custom_call.1']
    %10 = vsyncpa [#allocation3], 0
    %11 = vsyncpa [#allocation6], 0
    %12 = vsyncpa [#allocation4], 0
    %13 = vsyncpa [#allocation9], 0
    // Predicated region
    $region2: #{tpu_custom_call.1} parent=1 // pred_check
      _
    $region3: #{tpu_custom_call.1} parent=1 // pred_check_branch
      %15 = sbr.rel (0) target = $region5
    $region4: #{tpu_custom_call.1} parent=1 // pred_region
      %s17 = ssub.s32 32, 32
      %18 = vsyncadd [#allocation3], %s17
      %s20 = sshll.u32 [#allocation2], 4
      %s21 = int_to_ptr.vmem [resolvable:$true] %s20
      %23 = dma.hbm_to_vmem [thread:$0]  %s0, 32, %s21, [#allocation3]
    $region5: #{tpu_custom_call.1} parent=1 // pred_fallthru
      _
    // Predicated region
    $region6: #{tpu_custom_call.1} parent=1 // pred_check
      _
    $region7: #{tpu_custom_call.1} parent=1 // pred_check_branch
      %25 = sbr.rel (0) target = $region9
    $region8: #{tpu_custom_call.1} parent=1 // pred_region
      _
    $region9: #{tpu_custom_call.1} parent=1 // pred_fallthru
      _
    // Predicated region
    $region10: #{tpu_custom_call.1} parent=1 // pred_check
      _
    $region11: #{tpu_custom_call.1} parent=1 // pred_check_branch
      %27 = sbr.rel (0) target = $region13
    $region12: #{tpu_custom_call.1} parent=1 // pred_region
      %s29 = ssub.s32 2048, 2048
      %30 = vsyncadd [#allocation6], %s29
      %s31 = sshll.u32 [#allocation5], 4
      %s32 = int_to_ptr.vmem [resolvable:$true] %s31
      %37 = dma.hbm_to_vmem [thread:$0]  %s2, 2048, %s32, [#allocation6], 128, 128, 8
    $region13: #{tpu_custom_call.1} parent=1 // pred_fallthru
      _
    // Predicated region
    $region14: #{tpu_custom_call.1} parent=1 // pred_check
      _
    $region15: #{tpu_custom_call.1} parent=1 // pred_check_branch
      %39 = sbr.rel (0) target = $region17
    $region16: #{tpu_custom_call.1} parent=1 // pred_region
      %40 = dma.done [#allocation3], 32
    $region17: #{tpu_custom_call.1} parent=1 // pred_fallthru
      _
    // Predicated region
    $region18: #{tpu_custom_call.1} parent=1 // pred_check
      _
    $region19: #{tpu_custom_call.1} parent=1 // pred_check_branch
      %42 = sbr.rel (0) target = $region21
    $region20: #{tpu_custom_call.1} parent=1 // pred_region
      %43 = dma.done [#allocation6], 2048
    $region21: #{tpu_custom_call.1} parent=1 // pred_fallthru
      _
    %v44 = vld [vmem:[#allocation5] sm:$0xff]
    %v45 = vld [vmem:[#allocation5 + $0x8] sm:$0xff]
    %v46 = vld [vmem:[#allocation5 + $0x10] sm:$0xff]
    %v47 = vld [vmem:[#allocation5 + $0x18] sm:$0xff]
    %v48 = vld [vmem:[#allocation5 + $0x20] sm:$0xff]
    %v49 = vld [vmem:[#allocation5 + $0x28] sm:$0xff]
    %v50 = vld [vmem:[#allocation5 + $0x30] sm:$0xff]
    %v51 = vld [vmem:[#allocation5 + $0x38] sm:$0xff]
    %v52 = vld [vmem:[#allocation5 + $0x40] sm:$0xff]
    %v53 = vld [vmem:[#allocation5 + $0x48] sm:$0xff]
    %v54 = vld [vmem:[#allocation5 + $0x50] sm:$0xff]
    %v55 = vld [vmem:[#allocation5 + $0x58] sm:$0xff]
    %v56 = vld [vmem:[#allocation5 + $0x60] sm:$0xff]
    %v57 = vld [vmem:[#allocation5 + $0x68] sm:$0xff]
    %v58 = vld [vmem:[#allocation5 + $0x70] sm:$0xff]
    %v59 = vld [vmem:[#allocation5 + $0x78] sm:$0xff]
    %v60 = vld [vmem:[#allocation2] sm:$0x3]
    %v61 = vlaneseq
    %v62 = vshrl.u32 %v61, 7
    %v63 = vadd.s32 %v62, 8
    %v64 = vadd.s32 %v62, 16
    %v65 = vadd.s32 %v62, 24
    %v66 = vadd.s32 %v62, 32
    %v67 = vadd.s32 %v62, 40
    %v68 = vadd.s32 %v62, 48
    %v69 = vadd.s32 %v62, 56
    %v70 = vadd.s32 %v62, 64
    %v71 = vadd.s32 %v62, 72
    %v72 = vadd.s32 %v62, 80
    %v73 = vadd.s32 %v62, 88
    %v74 = vadd.s32 %v62, 96
    %v75 = vadd.s32 %v62, 104
    %v76 = vadd.s32 %v62, 112
    %v77 = vadd.s32 %v62, 120
    %v78 = vlaneseq
    %v79 = vshrl.u32 %v78, 7
    %v80 = vsub.s32 0, %v79
    %v81 = vrot.slane %v60, %v80
    %v82 = vlaneseq
    %v83 = vshrl.u32 %v82, 7
    %v84 = vsub.s32 1, %v83
    %v85 = vrot.slane %v60, %v84
    %vm86 = vcmp.eq.s32.totalorder %v62, %v81
    %vm87 = vcmp.eq.s32.totalorder %v62, %v85
    %vm88 = vcmp.eq.s32.totalorder %v63, %v81
    %vm89 = vcmp.eq.s32.totalorder %v63, %v85
    %vm90 = vcmp.eq.s32.totalorder %v64, %v81
    %vm91 = vcmp.eq.s32.totalorder %v64, %v85
    %vm92 = vcmp.eq.s32.totalorder %v65, %v81
    %vm93 = vcmp.eq.s32.totalorder %v65, %v85
    %vm94 = vcmp.eq.s32.totalorder %v66, %v81
    %vm95 = vcmp.eq.s32.totalorder %v66, %v85
    %vm96 = vcmp.eq.s32.totalorder %v67, %v81
    %vm97 = vcmp.eq.s32.totalorder %v67, %v85
    %vm98 = vcmp.eq.s32.totalorder %v68, %v81
    %vm99 = vcmp.eq.s32.totalorder %v68, %v85
    %vm100 = vcmp.eq.s32.totalorder %v69, %v81
    %vm101 = vcmp.eq.s32.totalorder %v69, %v85
    %vm102 = vcmp.eq.s32.totalorder %v70, %v81
    %vm103 = vcmp.eq.s32.totalorder %v70, %v85
    %vm104 = vcmp.eq.s32.totalorder %v71, %v81
    %vm105 = vcmp.eq.s32.totalorder %v71, %v85
    %vm106 = vcmp.eq.s32.totalorder %v72, %v81
    %vm107 = vcmp.eq.s32.totalorder %v72, %v85
    %vm108 = vcmp.eq.s32.totalorder %v73, %v81
    %vm109 = vcmp.eq.s32.totalorder %v73, %v85
    %vm110 = vcmp.eq.s32.totalorder %v74, %v81
    %vm111 = vcmp.eq.s32.totalorder %v74, %v85
    %vm112 = vcmp.eq.s32.totalorder %v75, %v81
    %vm113 = vcmp.eq.s32.totalorder %v75, %v85
    %vm114 = vcmp.eq.s32.totalorder %v76, %v81
    %vm115 = vcmp.eq.s32.totalorder %v76, %v85
    %vm116 = vcmp.eq.s32.totalorder %v77, %v81
    %vm117 = vcmp.eq.s32.totalorder %v77, %v85
    %v118 = vsel %vm86, 1, 0
    %v119 = vsel %vm87, 1, 0
    %v120 = vsel %vm88, 1, 0
    %v121 = vsel %vm89, 1, 0
    %v122 = vsel %vm90, 1, 0
    %v123 = vsel %vm91, 1, 0
    %v124 = vsel %vm92, 1, 0
    %v125 = vsel %vm93, 1, 0
    %v126 = vsel %vm94, 1, 0
    %v127 = vsel %vm95, 1, 0
    %v128 = vsel %vm96, 1, 0
    %v129 = vsel %vm97, 1, 0
    %v130 = vsel %vm98, 1, 0
    %v131 = vsel %vm99, 1, 0
    %v132 = vsel %vm100, 1, 0
    %v133 = vsel %vm101, 1, 0
    %v134 = vsel %vm102, 1, 0
    %v135 = vsel %vm103, 1, 0
    %v136 = vsel %vm104, 1, 0
    %v137 = vsel %vm105, 1, 0
    %v138 = vsel %vm106, 1, 0
    %v139 = vsel %vm107, 1, 0
    %v140 = vsel %vm108, 1, 0
    %v141 = vsel %vm109, 1, 0
    %v142 = vsel %vm110, 1, 0
    %v143 = vsel %vm111, 1, 0
    %v144 = vsel %vm112, 1, 0
    %v145 = vsel %vm113, 1, 0
    %v146 = vsel %vm114, 1, 0
    %v147 = vsel %vm115, 1, 0
    %v148 = vsel %vm116, 1, 0
    %v149 = vsel %vm117, 1, 0
    %v150 = vcvt.s32.f32 %v118
    %v151 = vcvt.s32.f32 %v119
    %v152 = vcvt.s32.f32 %v120
    %v153 = vcvt.s32.f32 %v121
    %v154 = vcvt.s32.f32 %v122
    %v155 = vcvt.s32.f32 %v123
    %v156 = vcvt.s32.f32 %v124
    %v157 = vcvt.s32.f32 %v125
    %v158 = vcvt.s32.f32 %v126
    %v159 = vcvt.s32.f32 %v127
    %v160 = vcvt.s32.f32 %v128
    %v161 = vcvt.s32.f32 %v129
    %v162 = vcvt.s32.f32 %v130
    %v163 = vcvt.s32.f32 %v131
    %v164 = vcvt.s32.f32 %v132
    %v165 = vcvt.s32.f32 %v133
    %v166 = vcvt.s32.f32 %v134
    %v167 = vcvt.s32.f32 %v135
    %v168 = vcvt.s32.f32 %v136
    %v169 = vcvt.s32.f32 %v137
    %v170 = vcvt.s32.f32 %v138
    %v171 = vcvt.s32.f32 %v139
    %v172 = vcvt.s32.f32 %v140
    %v173 = vcvt.s32.f32 %v141
    %v174 = vcvt.s32.f32 %v142
    %v175 = vcvt.s32.f32 %v143
    %v176 = vcvt.s32.f32 %v144
    %v177 = vcvt.s32.f32 %v145
    %v178 = vcvt.s32.f32 %v146
    %v179 = vcvt.s32.f32 %v147
    %v180 = vcvt.s32.f32 %v148
    %v181 = vcvt.s32.f32 %v149
    %182 = vxpose.xlu0.b32.start [1/16] %v150, 128
    %183 = vxpose.xlu0.b32.cont [2/16] %v152, 128
    %184 = vxpose.xlu0.b32.cont [3/16] %v154, 128
    %185 = vxpose.xlu0.b32.cont [4/16] %v156, 128
    %186 = vxpose.xlu0.b32.cont [5/16] %v158, 128
    %187 = vxpose.xlu0.b32.cont [6/16] %v160, 128
    %188 = vxpose.xlu0.b32.cont [7/16] %v162, 128
    %189 = vxpose.xlu0.b32.cont [8/16] %v164, 128
    %190 = vxpose.xlu0.b32.cont [9/16] %v166, 128
    %191 = vxpose.xlu0.b32.cont [10/16] %v168, 128
    %192 = vxpose.xlu0.b32.cont [11/16] %v170, 128
    %193 = vxpose.xlu0.b32.cont [12/16] %v172, 128
    %194 = vxpose.xlu0.b32.cont [13/16] %v174, 128
    %195 = vxpose.xlu0.b32.cont [14/16] %v176, 128
    %196 = vxpose.xlu0.b32.cont [15/16] %v178, 128
    %197 = vxpose.xlu0.b32.end [16/16] %v180, 128
    %v198 = vpop.trf.xlu0
    %v199 = vpop.trf.xlu0
    %v200 = vpop.trf.xlu0
    %v201 = vpop.trf.xlu0
    %v202 = vpop.trf.xlu0
    %v203 = vpop.trf.xlu0
    %v204 = vpop.trf.xlu0
    %v205 = vpop.trf.xlu0
    %v206 = vpop.trf.xlu0
    %v207 = vpop.trf.xlu0
    %v208 = vpop.trf.xlu0
    %v209 = vpop.trf.xlu0
    %v210 = vpop.trf.xlu0
    %v211 = vpop.trf.xlu0
    %v212 = vpop.trf.xlu0
    %v213 = vpop.trf.xlu0
    %214 = vxpose.xlu0.b32.start [1/16] %v151, 128
    %215 = vxpose.xlu0.b32.cont [2/16] %v153, 128
    %216 = vxpose.xlu0.b32.cont [3/16] %v155, 128
    %217 = vxpose.xlu0.b32.cont [4/16] %v157, 128
    %218 = vxpose.xlu0.b32.cont [5/16] %v159, 128
    %219 = vxpose.xlu0.b32.cont [6/16] %v161, 128
    %220 = vxpose.xlu0.b32.cont [7/16] %v163, 128
    %221 = vxpose.xlu0.b32.cont [8/16] %v165, 128
    %222 = vxpose.xlu0.b32.cont [9/16] %v167, 128
    %223 = vxpose.xlu0.b32.cont [10/16] %v169, 128
    %224 = vxpose.xlu0.b32.cont [11/16] %v171, 128
    %225 = vxpose.xlu0.b32.cont [12/16] %v173, 128
    %226 = vxpose.xlu0.b32.cont [13/16] %v175, 128
    %227 = vxpose.xlu0.b32.cont [14/16] %v177, 128
    %228 = vxpose.xlu0.b32.cont [15/16] %v179, 128
    %229 = vxpose.xlu0.b32.end [16/16] %v181, 128
    %v230 = vpop.trf.xlu0
    %v231 = vpop.trf.xlu0
    %v232 = vpop.trf.xlu0
    %v233 = vpop.trf.xlu0
    %v234 = vpop.trf.xlu0
    %v235 = vpop.trf.xlu0
    %v236 = vpop.trf.xlu0
    %v237 = vpop.trf.xlu0
    %v238 = vpop.trf.xlu0
    %v239 = vpop.trf.xlu0
    %v240 = vpop.trf.xlu0
    %v241 = vpop.trf.xlu0
    %v242 = vpop.trf.xlu0
    %v243 = vpop.trf.xlu0
    %v244 = vpop.trf.xlu0
    %v245 = vpop.trf.xlu0
    %246 = vmatprep.subr.mxu0 0.0
    %247 = vmatpush1.msra.mxu0 %v44
    %248 = vmatprep.subr.mxu0 0.0
    %249 = vmatpush1.msra.mxu0 %v45
    %250 = vmatprep.subr.mxu0 0.0
    %251 = vmatpush1.msra.mxu0 %v46
    %252 = vmatprep.subr.mxu0 0.0
    %253 = vmatpush1.msra.mxu0 %v47
    %254 = vmatprep.subr.mxu0 0.0
    %255 = vmatpush1.msra.mxu0 %v48
    %256 = vmatprep.subr.mxu0 0.0
    %257 = vmatpush1.msra.mxu0 %v49
    %258 = vmatprep.subr.mxu0 0.0
    %259 = vmatpush1.msra.mxu0 %v50
    %260 = vmatprep.subr.mxu0 0.0
    %261 = vmatpush1.msra.mxu0 %v51
    %262 = vmatprep.subr.mxu0 0.0
    %263 = vmatpush1.msra.mxu0 %v52
    %264 = vmatprep.subr.mxu0 0.0
    %265 = vmatpush1.msra.mxu0 %v53
    %266 = vmatprep.subr.mxu0 0.0
    %267 = vmatpush1.msra.mxu0 %v54
    %268 = vmatprep.subr.mxu0 0.0
    %269 = vmatpush1.msra.mxu0 %v55
    %270 = vmatprep.subr.mxu0 0.0
    %271 = vmatpush1.msra.mxu0 %v56
    %272 = vmatprep.subr.mxu0 0.0
    %273 = vmatpush1.msra.mxu0 %v57
    %274 = vmatprep.subr.mxu0 0.0
    %275 = vmatpush1.msra.mxu0 %v58
    %276 = vmatprep.subr.mxu0 0.0
    %277 = vmatpush1.msra.mxu0 %v59
    %278 = vmatprep.subr.mxu0 0.0
    %279 = vmatpush1.msra.mxu0 0.0
    %280 = vmatprep.subr.mxu0 0.0
    %281 = vmatpush1.msra.mxu0 0.0
    %282 = vmatprep.subr.mxu0 0.0
    %283 = vmatpush1.msra.mxu0 0.0
    %284 = vmatprep.subr.mxu0 0.0
    %285 = vmatpush1.msra.mxu0 0.0
    %286 = vmatprep.subr.mxu0 0.0
    %287 = vmatpush1.msra.mxu0 0.0
    %288 = vmatprep.subr.mxu0 0.0
    %289 = vmatpush1.msra.mxu0 0.0
    %290 = vmatprep.subr.mxu0 0.0
    %291 = vmatpush1.msra.mxu0 0.0
    %292 = vmatprep.subr.mxu0 0.0
    %293 = vmatpush1.msra.mxu0 0.0
    %294 = vmatprep.subr.mxu0 0.0
    %295 = vmatpush1.msra.mxu0 0.0
    %296 = vmatprep.subr.mxu0 0.0
    %297 = vmatpush1.msra.mxu0 0.0
    %298 = vmatprep.subr.mxu0 0.0
    %299 = vmatpush1.msra.mxu0 0.0
    %300 = vmatprep.subr.mxu0 0.0
    %301 = vmatpush1.msra.mxu0 0.0
    %302 = vmatprep.subr.mxu0 0.0
    %303 = vmatpush1.msra.mxu0 0.0
    %304 = vmatprep.subr.mxu0 0.0
    %305 = vmatpush1.msra.mxu0 0.0
    %306 = vmatprep.subr.mxu0 0.0
    %307 = vmatpush1.msra.mxu0 0.0
    %308 = vmatprep.subr.mxu0 0.0
    %309 = vmatpush1.msra.mxu0 0.0
    %310 = vmatprep.mubr.f32.mxu0 0.0
    %311 = vmatmul.mubr.f32.gmra.mrb[0].mxu0 %v198
    %v312 = vpop.f32.mrb[0].mxu0
    %v313 = vadd.f32 0.0, %v312
    %v314 = vpop.f32.mrb[0].mxu0
    %315 = vmatprep.mubr.f32.mxu0 0.0
    %316 = vmatmul.mubr.f32.gmra.mrb[0].mxu0 %v199
    %v317 = vpop.f32.mrb[0].mxu0
    %v318 = vadd.f32 0.0, %v317
    %v319 = vpop.f32.mrb[0].mxu0
    %320 = vmatprep.mubr.f32.mxu0 0.0
    %321 = vmatmul.mubr.f32.gmra.mrb[0].mxu0 %v200
    %v322 = vpop.f32.mrb[0].mxu0
    %v323 = vadd.f32 0.0, %v322
    %v324 = vpop.f32.mrb[0].mxu0
    %325 = vmatprep.mubr.f32.mxu0 0.0
    %326 = vmatmul.mubr.f32.gmra.mrb[0].mxu0 %v201
    %v327 = vpop.f32.mrb[0].mxu0
    %v328 = vadd.f32 0.0, %v327
    %v329 = vpop.f32.mrb[0].mxu0
    %330 = vmatprep.mubr.f32.mxu0 0.0
    %331 = vmatmul.mubr.f32.gmra.mrb[0].mxu0 %v202
    %v332 = vpop.f32.mrb[0].mxu0
    %v333 = vadd.f32 0.0, %v332
    %v334 = vpop.f32.mrb[0].mxu0
    %335 = vmatprep.mubr.f32.mxu0 0.0
    %336 = vmatmul.mubr.f32.gmra.mrb[0].mxu0 %v203
    %v337 = vpop.f32.mrb[0].mxu0
    %v338 = vadd.f32 0.0, %v337
    %v339 = vpop.f32.mrb[0].mxu0
    %340 = vmatprep.mubr.f32.mxu0 0.0
    %341 = vmatmul.mubr.f32.gmra.mrb[0].mxu0 %v204
    %v342 = vpop.f32.mrb[0].mxu0
    %v343 = vadd.f32 0.0, %v342
    %v344 = vpop.f32.mrb[0].mxu0
    %345 = vmatprep.mubr.f32.mxu0 0.0
    %346 = vmatmul.mubr.f32.gmra.mrb[0].mxu0 %v205
    %v347 = vpop.f32.mrb[0].mxu0
    %v348 = vadd.f32 0.0, %v347
    %v349 = vpop.f32.mrb[0].mxu0
    %350 = vmatprep.mubr.f32.mxu0 0.0
    %351 = vmatmul.mubr.f32.gmra.mrb[0].mxu0 %v206
    %v352 = vpop.f32.mrb[0].mxu0
    %v353 = vadd.f32 0.0, %v352
    %v354 = vpop.f32.mrb[0].mxu0
    %355 = vmatprep.mubr.f32.mxu0 0.0
    %356 = vmatmul.mubr.f32.gmra.mrb[0].mxu0 %v207
    %v357 = vpop.f32.mrb[0].mxu0
    %v358 = vadd.f32 0.0, %v357
    %v359 = vpop.f32.mrb[0].mxu0
    %360 = vmatprep.mubr.f32.mxu0 0.0
    %361 = vmatmul.mubr.f32.gmra.mrb[0].mxu0 %v208
    %v362 = vpop.f32.mrb[0].mxu0
    %v363 = vadd.f32 0.0, %v362
    %v364 = vpop.f32.mrb[0].mxu0
    %365 = vmatprep.mubr.f32.mxu0 0.0
    %366 = vmatmul.mubr.f32.gmra.mrb[0].mxu0 %v209
    %v367 = vpop.f32.mrb[0].mxu0
    %v368 = vadd.f32 0.0, %v367
    %v369 = vpop.f32.mrb[0].mxu0
    %370 = vmatprep.mubr.f32.mxu0 0.0
    %371 = vmatmul.mubr.f32.gmra.mrb[0].mxu0 %v210
    %v372 = vpop.f32.mrb[0].mxu0
    %v373 = vadd.f32 0.0, %v372
    %v374 = vpop.f32.mrb[0].mxu0
    %375 = vmatprep.mubr.f32.mxu0 0.0
    %376 = vmatmul.mubr.f32.gmra.mrb[0].mxu0 %v211
    %v377 = vpop.f32.mrb[0].mxu0
    %v378 = vadd.f32 0.0, %v377
    %v379 = vpop.f32.mrb[0].mxu0
    %380 = vmatprep.mubr.f32.mxu0 0.0
    %381 = vmatmul.mubr.f32.gmra.mrb[0].mxu0 %v212
    %v382 = vpop.f32.mrb[0].mxu0
    %v383 = vadd.f32 0.0, %v382
    %v384 = vpop.f32.mrb[0].mxu0
    %385 = vmatprep.mubr.f32.mxu0 0.0
    %386 = vmatmul.mubr.f32.gmra.mrb[0].mxu0 %v213
    %v387 = vpop.f32.mrb[0].mxu0
    %v388 = vadd.f32 0.0, %v387
    %v389 = vpop.f32.mrb[0].mxu0
    %390 = vmatprep.mubr.f32.mxu0 0.0
    %391 = vmatmul.mubr.f32.gmra.mrb[0].mxu0 %v230
    %v392 = vpop.f32.mrb[0].mxu0
    %v393 = vadd.f32 0.0, %v392
    %v394 = vpop.f32.mrb[0].mxu0
    %395 = vmatprep.mubr.f32.mxu0 0.0
    %396 = vmatmul.mubr.f32.gmra.mrb[0].mxu0 %v231
    %v397 = vpop.f32.mrb[0].mxu0
    %v398 = vadd.f32 0.0, %v397
    %v399 = vpop.f32.mrb[0].mxu0
    %400 = vmatprep.mubr.f32.mxu0 0.0
    %401 = vmatmul.mubr.f32.gmra.mrb[0].mxu0 %v232
    %v402 = vpop.f32.mrb[0].mxu0
    %v403 = vadd.f32 0.0, %v402
    %v404 = vpop.f32.mrb[0].mxu0
    %405 = vmatprep.mubr.f32.mxu0 0.0
    %406 = vmatmul.mubr.f32.gmra.mrb[0].mxu0 %v233
    %v407 = vpop.f32.mrb[0].mxu0
    %v408 = vadd.f32 0.0, %v407
    %v409 = vpop.f32.mrb[0].mxu0
    %410 = vmatprep.mubr.f32.mxu0 0.0
    %411 = vmatmul.mubr.f32.gmra.mrb[0].mxu0 %v234
    %v412 = vpop.f32.mrb[0].mxu0
    %v413 = vadd.f32 0.0, %v412
    %v414 = vpop.f32.mrb[0].mxu0
    %415 = vmatprep.mubr.f32.mxu0 0.0
    %416 = vmatmul.mubr.f32.gmra.mrb[0].mxu0 %v235
    %v417 = vpop.f32.mrb[0].mxu0
    %v418 = vadd.f32 0.0, %v417
    %v419 = vpop.f32.mrb[0].mxu0
    %420 = vmatprep.mubr.f32.mxu0 0.0
    %421 = vmatmul.mubr.f32.gmra.mrb[0].mxu0 %v236
    %v422 = vpop.f32.mrb[0].mxu0
    %v423 = vadd.f32 0.0, %v422
    %v424 = vpop.f32.mrb[0].mxu0
    %425 = vmatprep.mubr.f32.mxu0 0.0
    %426 = vmatmul.mubr.f32.gmra.mrb[0].mxu0 %v237
    %v427 = vpop.f32.mrb[0].mxu0
    %v428 = vadd.f32 0.0, %v427
    %v429 = vpop.f32.mrb[0].mxu0
    %430 = vmatprep.mubr.f32.mxu0 0.0
    %431 = vmatmul.mubr.f32.gmra.mrb[0].mxu0 %v238
    %v432 = vpop.f32.mrb[0].mxu0
    %v433 = vadd.f32 0.0, %v432
    %v434 = vpop.f32.mrb[0].mxu0
    %435 = vmatprep.mubr.f32.mxu0 0.0
    %436 = vmatmul.mubr.f32.gmra.mrb[0].mxu0 %v239
    %v437 = vpop.f32.mrb[0].mxu0
    %v438 = vadd.f32 0.0, %v437
    %v439 = vpop.f32.mrb[0].mxu0
    %440 = vmatprep.mubr.f32.mxu0 0.0
    %441 = vmatmul.mubr.f32.gmra.mrb[0].mxu0 %v240
    %v442 = vpop.f32.mrb[0].mxu0
    %v443 = vadd.f32 0.0, %v442
    %v444 = vpop.f32.mrb[0].mxu0
    %445 = vmatprep.mubr.f32.mxu0 0.0
    %446 = vmatmul.mubr.f32.gmra.mrb[0].mxu0 %v241
    %v447 = vpop.f32.mrb[0].mxu0
    %v448 = vadd.f32 0.0, %v447
    %v449 = vpop.f32.mrb[0].mxu0
    %450 = vmatprep.mubr.f32.mxu0 0.0
    %451 = vmatmul.mubr.f32.gmra.mrb[0].mxu0 %v242
    %v452 = vpop.f32.mrb[0].mxu0
    %v453 = vadd.f32 0.0, %v452
    %v454 = vpop.f32.mrb[0].mxu0
    %455 = vmatprep.mubr.f32.mxu0 0.0
    %456 = vmatmul.mubr.f32.gmra.mrb[0].mxu0 %v243
    %v457 = vpop.f32.mrb[0].mxu0
    %v458 = vadd.f32 0.0, %v457
    %v459 = vpop.f32.mrb[0].mxu0
    %460 = vmatprep.mubr.f32.mxu0 0.0
    %461 = vmatmul.mubr.f32.gmra.mrb[0].mxu0 %v244
    %v462 = vpop.f32.mrb[0].mxu0
    %v463 = vadd.f32 0.0, %v462
    %v464 = vpop.f32.mrb[0].mxu0
    %465 = vmatprep.mubr.f32.mxu0 0.0
    %466 = vmatmul.mubr.f32.gmra.mrb[0].mxu0 %v245
    %v467 = vpop.f32.mrb[0].mxu0
    %v468 = vadd.f32 0.0, %v467
    %v469 = vpop.f32.mrb[0].mxu0
    %470 = vdwg.mxu0
    %471 = vst [vmem:[#allocation7] sm:$0xff] %v313
    %472 = vst [vmem:[#allocation7 + $0x8] sm:$0xff] %v318
    %473 = vst [vmem:[#allocation7 + $0x10] sm:$0xff] %v323
    %474 = vst [vmem:[#allocation7 + $0x18] sm:$0xff] %v328
    %475 = vst [vmem:[#allocation7 + $0x20] sm:$0xff] %v333
    %476 = vst [vmem:[#allocation7 + $0x28] sm:$0xff] %v338
    %477 = vst [vmem:[#allocation7 + $0x30] sm:$0xff] %v343
    %478 = vst [vmem:[#allocation7 + $0x38] sm:$0xff] %v348
    %479 = vst [vmem:[#allocation7 + $0x40] sm:$0xff] %v353
    %480 = vst [vmem:[#allocation7 + $0x48] sm:$0xff] %v358
    %481 = vst [vmem:[#allocation7 + $0x50] sm:$0xff] %v363
    %482 = vst [vmem:[#allocation7 + $0x58] sm:$0xff] %v368
    %483 = vst [vmem:[#allocation7 + $0x60] sm:$0xff] %v373
    %484 = vst [vmem:[#allocation7 + $0x68] sm:$0xff] %v378
    %485 = vst [vmem:[#allocation7 + $0x70] sm:$0xff] %v383
    %486 = vst [vmem:[#allocation7 + $0x78] sm:$0xff] %v388
    %487 = vst [vmem:[#allocation7 + $0x80] sm:$0xff] %v393
    %488 = vst [vmem:[#allocation7 + $0x88] sm:$0xff] %v398
    %489 = vst [vmem:[#allocation7 + $0x90] sm:$0xff] %v403
    %490 = vst [vmem:[#allocation7 + $0x98] sm:$0xff] %v408
    %491 = vst [vmem:[#allocation7 + $0xa0] sm:$0xff] %v413
    %492 = vst [vmem:[#allocation7 + $0xa8] sm:$0xff] %v418
    %493 = vst [vmem:[#allocation7 + $0xb0] sm:$0xff] %v423
    %494 = vst [vmem:[#allocation7 + $0xb8] sm:$0xff] %v428
    %495 = vst [vmem:[#allocation7 + $0xc0] sm:$0xff] %v433
    %496 = vst [vmem:[#allocation7 + $0xc8] sm:$0xff] %v438
    %497 = vst [vmem:[#allocation7 + $0xd0] sm:$0xff] %v443
    %498 = vst [vmem:[#allocation7 + $0xd8] sm:$0xff] %v448
    %499 = vst [vmem:[#allocation7 + $0xe0] sm:$0xff] %v453
    %500 = vst [vmem:[#allocation7 + $0xe8] sm:$0xff] %v458
    %501 = vst [vmem:[#allocation7 + $0xf0] sm:$0xff] %v463
    %502 = vst [vmem:[#allocation7 + $0xf8] sm:$0xff] %v468
    %503 = vxpose.xlu0.b32.start [1/16] %v44, 128
    %504 = vxpose.xlu0.b32.cont [2/16] %v45, 128
    %505 = vxpose.xlu0.b32.cont [3/16] %v46, 128
    %506 = vxpose.xlu0.b32.cont [4/16] %v47, 128
    %507 = vxpose.xlu0.b32.cont [5/16] %v48, 128
    %508 = vxpose.xlu0.b32.cont [6/16] %v49, 128
    %509 = vxpose.xlu0.b32.cont [7/16] %v50, 128
    %510 = vxpose.xlu0.b32.cont [8/16] %v51, 128
    %511 = vxpose.xlu0.b32.cont [9/16] %v52, 128
    %512 = vxpose.xlu0.b32.cont [10/16] %v53, 128
    %513 = vxpose.xlu0.b32.cont [11/16] %v54, 128
    %514 = vxpose.xlu0.b32.cont [12/16] %v55, 128
    %515 = vxpose.xlu0.b32.cont [13/16] %v56, 128
    %516 = vxpose.xlu0.b32.cont [14/16] %v57, 128
    %517 = vxpose.xlu0.b32.cont [15/16] %v58, 128
    %518 = vxpose.xlu0.b32.end [16/16] %v59, 128
    %v519 = vpop.trf.xlu0
    %v520 = vpop.trf.xlu0
    %v521 = vpop.trf.xlu0
    %v522 = vpop.trf.xlu0
    %v523 = vpop.trf.xlu0
    %v524 = vpop.trf.xlu0
    %v525 = vpop.trf.xlu0
    %v526 = vpop.trf.xlu0
    %v527 = vpop.trf.xlu0
    %v528 = vpop.trf.xlu0
    %v529 = vpop.trf.xlu0
    %v530 = vpop.trf.xlu0
    %v531 = vpop.trf.xlu0
    %v532 = vpop.trf.xlu0
    %v533 = vpop.trf.xlu0
    %v534 = vpop.trf.xlu0
    %535 = vmatprep.subr.mxu0 %v151
    %536 = vmatpush1.msra.mxu0 %v150
    %537 = vmatprep.subr.mxu0 %v153
    %538 = vmatpush1.msra.mxu0 %v152
    %539 = vmatprep.subr.mxu0 %v155
    %540 = vmatpush1.msra.mxu0 %v154
    %541 = vmatprep.subr.mxu0 %v157
    %542 = vmatpush1.msra.mxu0 %v156
    %543 = vmatprep.subr.mxu0 %v159
    %544 = vmatpush1.msra.mxu0 %v158
    %545 = vmatprep.subr.mxu0 %v161
    %546 = vmatpush1.msra.mxu0 %v160
    %547 = vmatprep.subr.mxu0 %v163
    %548 = vmatpush1.msra.mxu0 %v162
    %549 = vmatprep.subr.mxu0 %v165
    %550 = vmatpush1.msra.mxu0 %v164
    %551 = vmatprep.subr.mxu0 %v167
    %552 = vmatpush1.msra.mxu0 %v166
    %553 = vmatprep.subr.mxu0 %v169
    %554 = vmatpush1.msra.mxu0 %v168
    %555 = vmatprep.subr.mxu0 %v171
    %556 = vmatpush1.msra.mxu0 %v170
    %557 = vmatprep.subr.mxu0 %v173
    %558 = vmatpush1.msra.mxu0 %v172
    %559 = vmatprep.subr.mxu0 %v175
    %560 = vmatpush1.msra.mxu0 %v174
    %561 = vmatprep.subr.mxu0 %v177
    %562 = vmatpush1.msra.mxu0 %v176
    %563 = vmatprep.subr.mxu0 %v179
    %564 = vmatpush1.msra.mxu0 %v178
    %565 = vmatprep.subr.mxu0 %v181
    %566 = vmatpush1.msra.mxu0 %v180
    %567 = vmatprep.subr.mxu0 0.0
    %568 = vmatpush1.msra.mxu0 0.0
    %569 = vmatprep.subr.mxu0 0.0
    %570 = vmatpush1.msra.mxu0 0.0
    %571 = vmatprep.subr.mxu0 0.0
    %572 = vmatpush1.msra.mxu0 0.0
    %573 = vmatprep.subr.mxu0 0.0
    %574 = vmatpush1.msra.mxu0 0.0
    %575 = vmatprep.subr.mxu0 0.0
    %576 = vmatpush1.msra.mxu0 0.0
    %577 = vmatprep.subr.mxu0 0.0
    %578 = vmatpush1.msra.mxu0 0.0
    %579 = vmatprep.subr.mxu0 0.0
    %580 = vmatpush1.msra.mxu0 0.0
    %581 = vmatprep.subr.mxu0 0.0
    %582 = vmatpush1.msra.mxu0 0.0
    %583 = vmatprep.subr.mxu0 0.0
    %584 = vmatpush1.msra.mxu0 0.0
    %585 = vmatprep.subr.mxu0 0.0
    %586 = vmatpush1.msra.mxu0 0.0
    %587 = vmatprep.subr.mxu0 0.0
    %588 = vmatpush1.msra.mxu0 0.0
    %589 = vmatprep.subr.mxu0 0.0
    %590 = vmatpush1.msra.mxu0 0.0
    %591 = vmatprep.subr.mxu0 0.0
    %592 = vmatpush1.msra.mxu0 0.0
    %593 = vmatprep.subr.mxu0 0.0
    %594 = vmatpush1.msra.mxu0 0.0
    %595 = vmatprep.subr.mxu0 0.0
    %596 = vmatpush1.msra.mxu0 0.0
    %597 = vmatprep.subr.mxu0 0.0
    %598 = vmatpush1.msra.mxu0 0.0
    %599 = vmatprep.mubr.f32.mxu0 0.0
    %600 = vmatmul.mubr.f32.gmra.mrb[0].mxu0 %v519
    %v601 = vpop.f32.mrb[0].mxu0
    %v602 = vadd.f32 0.0, %v601
    %v603 = vpop.f32.mrb[0].mxu0
    %v604 = vadd.f32 0.0, %v603
    %605 = vmatprep.mubr.f32.mxu0 0.0
    %606 = vmatmul.mubr.f32.gmra.mrb[0].mxu0 %v520
    %v607 = vpop.f32.mrb[0].mxu0
    %v608 = vadd.f32 0.0, %v607
    %v609 = vpop.f32.mrb[0].mxu0
    %v610 = vadd.f32 0.0, %v609
    %611 = vmatprep.mubr.f32.mxu0 0.0
    %612 = vmatmul.mubr.f32.gmra.mrb[0].mxu0 %v521
    %v613 = vpop.f32.mrb[0].mxu0
    %v614 = vadd.f32 0.0, %v613
    %v615 = vpop.f32.mrb[0].mxu0
    %v616 = vadd.f32 0.0, %v615
    %617 = vmatprep.mubr.f32.mxu0 0.0
    %618 = vmatmul.mubr.f32.gmra.mrb[0].mxu0 %v522
    %v619 = vpop.f32.mrb[0].mxu0
    %v620 = vadd.f32 0.0, %v619
    %v621 = vpop.f32.mrb[0].mxu0
    %v622 = vadd.f32 0.0, %v621
    %623 = vmatprep.mubr.f32.mxu0 0.0
    %624 = vmatmul.mubr.f32.gmra.mrb[0].mxu0 %v523
    %v625 = vpop.f32.mrb[0].mxu0
    %v626 = vadd.f32 0.0, %v625
    %v627 = vpop.f32.mrb[0].mxu0
    %v628 = vadd.f32 0.0, %v627
    %629 = vmatprep.mubr.f32.mxu0 0.0
    %630 = vmatmul.mubr.f32.gmra.mrb[0].mxu0 %v524
    %v631 = vpop.f32.mrb[0].mxu0
    %v632 = vadd.f32 0.0, %v631
    %v633 = vpop.f32.mrb[0].mxu0
    %v634 = vadd.f32 0.0, %v633
    %635 = vmatprep.mubr.f32.mxu0 0.0
    %636 = vmatmul.mubr.f32.gmra.mrb[0].mxu0 %v525
    %v637 = vpop.f32.mrb[0].mxu0
    %v638 = vadd.f32 0.0, %v637
    %v639 = vpop.f32.mrb[0].mxu0
    %v640 = vadd.f32 0.0, %v639
    %641 = vmatprep.mubr.f32.mxu0 0.0
    %642 = vmatmul.mubr.f32.gmra.mrb[0].mxu0 %v526
    %v643 = vpop.f32.mrb[0].mxu0
    %v644 = vadd.f32 0.0, %v643
    %v645 = vpop.f32.mrb[0].mxu0
    %v646 = vadd.f32 0.0, %v645
    %647 = vmatprep.mubr.f32.mxu0 0.0
    %648 = vmatmul.mubr.f32.gmra.mrb[0].mxu0 %v527
    %v649 = vpop.f32.mrb[0].mxu0
    %v650 = vadd.f32 0.0, %v649
    %v651 = vpop.f32.mrb[0].mxu0
    %v652 = vadd.f32 0.0, %v651
    %653 = vmatprep.mubr.f32.mxu0 0.0
    %654 = vmatmul.mubr.f32.gmra.mrb[0].mxu0 %v528
    %v655 = vpop.f32.mrb[0].mxu0
    %v656 = vadd.f32 0.0, %v655
    %v657 = vpop.f32.mrb[0].mxu0
    %v658 = vadd.f32 0.0, %v657
    %659 = vmatprep.mubr.f32.mxu0 0.0
    %660 = vmatmul.mubr.f32.gmra.mrb[0].mxu0 %v529
    %v661 = vpop.f32.mrb[0].mxu0
    %v662 = vadd.f32 0.0, %v661
    %v663 = vpop.f32.mrb[0].mxu0
    %v664 = vadd.f32 0.0, %v663
    %665 = vmatprep.mubr.f32.mxu0 0.0
    %666 = vmatmul.mubr.f32.gmra.mrb[0].mxu0 %v530
    %v667 = vpop.f32.mrb[0].mxu0
    %v668 = vadd.f32 0.0, %v667
    %v669 = vpop.f32.mrb[0].mxu0
    %v670 = vadd.f32 0.0, %v669
    %671 = vmatprep.mubr.f32.mxu0 0.0
    %672 = vmatmul.mubr.f32.gmra.mrb[0].mxu0 %v531
    %v673 = vpop.f32.mrb[0].mxu0
    %v674 = vadd.f32 0.0, %v673
    %v675 = vpop.f32.mrb[0].mxu0
    %v676 = vadd.f32 0.0, %v675
    %677 = vmatprep.mubr.f32.mxu0 0.0
    %678 = vmatmul.mubr.f32.gmra.mrb[0].mxu0 %v532
    %v679 = vpop.f32.mrb[0].mxu0
    %v680 = vadd.f32 0.0, %v679
    %v681 = vpop.f32.mrb[0].mxu0
    %v682 = vadd.f32 0.0, %v681
    %683 = vmatprep.mubr.f32.mxu0 0.0
    %684 = vmatmul.mubr.f32.gmra.mrb[0].mxu0 %v533
    %v685 = vpop.f32.mrb[0].mxu0
    %v686 = vadd.f32 0.0, %v685
    %v687 = vpop.f32.mrb[0].mxu0
    %v688 = vadd.f32 0.0, %v687
    %689 = vmatprep.mubr.f32.mxu0 0.0
    %690 = vmatmul.mubr.f32.gmra.mrb[0].mxu0 %v534
    %v691 = vpop.f32.mrb[0].mxu0
    %v692 = vadd.f32 0.0, %v691
    %v693 = vpop.f32.mrb[0].mxu0
    %v694 = vadd.f32 0.0, %v693
    %695 = vdwg.mxu0
    %v696 = vld [vmem:[%s1] sm:$0x3]
    %v697 = vmax.f32 %v602, %v614
    %v698 = vmax.f32 %v608, %v620
    %v699 = vmax.f32 %v697, %v626
    %v700 = vmax.f32 %v698, %v632
    %v701 = vmax.f32 %v699, %v638
    %v702 = vmax.f32 %v700, %v644
    %v703 = vmax.f32 %v701, %v650
    %v704 = vmax.f32 %v702, %v656
    %v705 = vmax.f32 %v703, %v662
    %v706 = vmax.f32 %v704, %v668
    %v707 = vmax.f32 %v705, %v674
    %v708 = vmax.f32 %v706, %v680
    %v709 = vmax.f32 %v707, %v686
    %v710 = vmax.f32 %v708, %v692
    %v711 = vmax.f32 %v709, %v710
    %v712 = vrot.slane %v711, 4
    %v713 = vmax.f32 %v711, %v712
    %v714 = vrot.slane %v713, 2
    %v715 = vmax.f32 %v713, %v714
    %v716 = vrot.slane %v715, 1
    %v717 = vmax.f32 %v715, %v716
    %v718 = vmax.f32 %v604, %v616
    %v719 = vmax.f32 %v610, %v622
    %v720 = vmax.f32 %v718, %v628
    %v721 = vmax.f32 %v719, %v634
    %v722 = vmax.f32 %v720, %v640
    %v723 = vmax.f32 %v721, %v646
    %v724 = vmax.f32 %v722, %v652
    %v725 = vmax.f32 %v723, %v658
    %v726 = vmax.f32 %v724, %v664
    %v727 = vmax.f32 %v725, %v670
    %v728 = vmax.f32 %v726, %v676
    %v729 = vmax.f32 %v727, %v682
    %v730 = vmax.f32 %v728, %v688
    %v731 = vmax.f32 %v729, %v694
    %v732 = vmax.f32 %v730, %v731
    %v733 = vrot.slane %v732, 4
    %v734 = vmax.f32 %v732, %v733
    %v735 = vrot.slane %v734, 2
    %v736 = vmax.f32 %v734, %v735
    %v737 = vrot.slane %v736, 1
    %v738 = vmax.f32 %v736, %v737
    %v739 = vsub.f32 %v602, %v717
    %v740 = vsub.f32 %v604, %v738
    %v741 = vsub.f32 %v608, %v717
    %v742 = vsub.f32 %v610, %v738
    %v743 = vsub.f32 %v614, %v717
    %v744 = vsub.f32 %v616, %v738
    %v745 = vsub.f32 %v620, %v717
    %v746 = vsub.f32 %v622, %v738
    %v747 = vsub.f32 %v626, %v717
    %v748 = vsub.f32 %v628, %v738
    %v749 = vsub.f32 %v632, %v717
    %v750 = vsub.f32 %v634, %v738
    %v751 = vsub.f32 %v638, %v717
    %v752 = vsub.f32 %v640, %v738
    %v753 = vsub.f32 %v644, %v717
    %v754 = vsub.f32 %v646, %v738
    %v755 = vsub.f32 %v650, %v717
    %v756 = vsub.f32 %v652, %v738
    %v757 = vsub.f32 %v656, %v717
    %v758 = vsub.f32 %v658, %v738
    %v759 = vsub.f32 %v662, %v717
    %v760 = vsub.f32 %v664, %v738
    %v761 = vsub.f32 %v668, %v717
    %v762 = vsub.f32 %v670, %v738
    %v763 = vsub.f32 %v674, %v717
    %v764 = vsub.f32 %v676, %v738
    %v765 = vsub.f32 %v680, %v717
    %v766 = vsub.f32 %v682, %v738
    %v767 = vsub.f32 %v686, %v717
    %v768 = vsub.f32 %v688, %v738
    %v769 = vsub.f32 %v692, %v717
    %v770 = vsub.f32 %v694, %v738
    %v771 = vmul.f32 %v739, 1.442695
    %v772 = vpow.pop %v771
    %v773 = vmul.f32 %v740, 1.442695
    %v774 = vpow.pop %v773
    %v775 = vmul.f32 %v741, 1.442695
    %v776 = vpow.pop %v775
    %v777 = vmul.f32 %v742, 1.442695
    %v778 = vpow.pop %v777
    %v779 = vmul.f32 %v743, 1.442695
    %v780 = vpow.pop %v779
    %v781 = vmul.f32 %v744, 1.442695
    %v782 = vpow.pop %v781
    %v783 = vmul.f32 %v745, 1.442695
    %v784 = vpow.pop %v783
    %v785 = vmul.f32 %v746, 1.442695
    %v786 = vpow.pop %v785
    %v787 = vmul.f32 %v747, 1.442695
    %v788 = vpow.pop %v787
    %v789 = vmul.f32 %v748, 1.442695
    %v790 = vpow.pop %v789
    %v791 = vmul.f32 %v749, 1.442695
    %v792 = vpow.pop %v791
    %v793 = vmul.f32 %v750, 1.442695
    %v794 = vpow.pop %v793
    %v795 = vmul.f32 %v751, 1.442695
    %v796 = vpow.pop %v795
    %v797 = vmul.f32 %v752, 1.442695
    %v798 = vpow.pop %v797
    %v799 = vmul.f32 %v753, 1.442695
    %v800 = vpow.pop %v799
    %v801 = vmul.f32 %v754, 1.442695
    %v802 = vpow.pop %v801
    %v803 = vmul.f32 %v755, 1.442695
    %v804 = vpow.pop %v803
    %v805 = vmul.f32 %v756, 1.442695
    %v806 = vpow.pop %v805
    %v807 = vmul.f32 %v757, 1.442695
    %v808 = vpow.pop %v807
    %v809 = vmul.f32 %v758, 1.442695
    %v810 = vpow.pop %v809
    %v811 = vmul.f32 %v759, 1.442695
    %v812 = vpow.pop %v811
    %v813 = vmul.f32 %v760, 1.442695
    %v814 = vpow.pop %v813
    %v815 = vmul.f32 %v761, 1.442695
    %v816 = vpow.pop %v815
    %v817 = vmul.f32 %v762, 1.442695
    %v818 = vpow.pop %v817
    %v819 = vmul.f32 %v763, 1.442695
    %v820 = vpow.pop %v819
    %v821 = vmul.f32 %v764, 1.442695
    %v822 = vpow.pop %v821
    %v823 = vmul.f32 %v765, 1.442695
    %v824 = vpow.pop %v823
    %v825 = vmul.f32 %v766, 1.442695
    %v826 = vpow.pop %v825
    %v827 = vmul.f32 %v767, 1.442695
    %v828 = vpow.pop %v827
    %v829 = vmul.f32 %v768, 1.442695
    %v830 = vpow.pop %v829
    %v831 = vmul.f32 %v769, 1.442695
    %v832 = vpow.pop %v831
    %v833 = vmul.f32 %v770, 1.442695
    %v834 = vpow.pop %v833
    %v835 = vadd.f32 %v772, %v776
    %v836 = vadd.f32 %v835, %v780
    %v837 = vadd.f32 %v836, %v784
    %v838 = vadd.f32 %v837, %v788
    %v839 = vadd.f32 %v838, %v792
    %v840 = vadd.f32 %v839, %v796
    %v841 = vadd.f32 %v840, %v800
    %v842 = vadd.f32 %v841, %v804
    %v843 = vadd.f32 %v842, %v808
    %v844 = vadd.f32 %v843, %v812
    %v845 = vadd.f32 %v844, %v816
    %v846 = vadd.f32 %v845, %v820
    %v847 = vadd.f32 %v846, %v824
    %v848 = vadd.f32 %v847, %v828
    %v849 = vadd.f32 %v848, %v832
    %v850 = vrot.slane %v849, 4
    %v851 = vadd.f32 %v849, %v850
    %v852 = vrot.slane %v851, 2
    %v853 = vadd.f32 %v851, %v852
    %v854 = vrot.slane %v853, 1
    %v855 = vadd.f32 %v853, %v854
    %v856 = vadd.f32 %v774, %v778
    %v857 = vadd.f32 %v856, %v782
    %v858 = vadd.f32 %v857, %v786
    %v859 = vadd.f32 %v858, %v790
    %v860 = vadd.f32 %v859, %v794
    %v861 = vadd.f32 %v860, %v798
    %v862 = vadd.f32 %v861, %v802
    %v863 = vadd.f32 %v862, %v806
    %v864 = vadd.f32 %v863, %v810
    %v865 = vadd.f32 %v864, %v814
    %v866 = vadd.f32 %v865, %v818
    %v867 = vadd.f32 %v866, %v822
    %v868 = vadd.f32 %v867, %v826
    %v869 = vadd.f32 %v868, %v830
    %v870 = vadd.f32 %v869, %v834
    %v871 = vrot.slane %v870, 4
    %v872 = vadd.f32 %v870, %v871
    %v873 = vrot.slane %v872, 2
    %v874 = vadd.f32 %v872, %v873
    %v875 = vrot.slane %v874, 1
    %v876 = vadd.f32 %v874, %v875
    %v877 = vlog2.pop %v855
    %v878 = vmul.f32 %v877, 0.6931472
    %v879 = vlog2.pop %v876
    %v880 = vmul.f32 %v879, 0.6931472
    %v881 = vadd.f32 %v717, %v878
    %v882 = vadd.f32 %v738, %v880
    %v883 = vlaneseq
    %v884 = vshrl.u32 %v883, 7
    %v885 = vsub.s32 0, %v884
    %v886 = vrot.slane %v696, %v885
    %v887 = vlaneseq
    %v888 = vshrl.u32 %v887, 7
    %v889 = vsub.s32 1, %v888
    %v890 = vrot.slane %v696, %v889
    %vm891 = vcmp.eq.s32.totalorder %v62, %v886
    %vm892 = vcmp.eq.s32.totalorder %v62, %v890
    %vm893 = vcmp.eq.s32.totalorder %v63, %v886
    %vm894 = vcmp.eq.s32.totalorder %v63, %v890
    %vm895 = vcmp.eq.s32.totalorder %v64, %v886
    %vm896 = vcmp.eq.s32.totalorder %v64, %v890
    %vm897 = vcmp.eq.s32.totalorder %v65, %v886
    %vm898 = vcmp.eq.s32.totalorder %v65, %v890
    %vm899 = vcmp.eq.s32.totalorder %v66, %v886
    %vm900 = vcmp.eq.s32.totalorder %v66, %v890
    %vm901 = vcmp.eq.s32.totalorder %v67, %v886
    %vm902 = vcmp.eq.s32.totalorder %v67, %v890
    %vm903 = vcmp.eq.s32.totalorder %v68, %v886
    %vm904 = vcmp.eq.s32.totalorder %v68, %v890
    %vm905 = vcmp.eq.s32.totalorder %v69, %v886
    %vm906 = vcmp.eq.s32.totalorder %v69, %v890
    %vm907 = vcmp.eq.s32.totalorder %v70, %v886
    %vm908 = vcmp.eq.s32.totalorder %v70, %v890
    %vm909 = vcmp.eq.s32.totalorder %v71, %v886
    %vm910 = vcmp.eq.s32.totalorder %v71, %v890
    %vm911 = vcmp.eq.s32.totalorder %v72, %v886
    %vm912 = vcmp.eq.s32.totalorder %v72, %v890
    %vm913 = vcmp.eq.s32.totalorder %v73, %v886
    %vm914 = vcmp.eq.s32.totalorder %v73, %v890
    %vm915 = vcmp.eq.s32.totalorder %v74, %v886
    %vm916 = vcmp.eq.s32.totalorder %v74, %v890
    %vm917 = vcmp.eq.s32.totalorder %v75, %v886
    %vm918 = vcmp.eq.s32.totalorder %v75, %v890
    %vm919 = vcmp.eq.s32.totalorder %v76, %v886
    %vm920 = vcmp.eq.s32.totalorder %v76, %v890
    %vm921 = vcmp.eq.s32.totalorder %v77, %v886
    %vm922 = vcmp.eq.s32.totalorder %v77, %v890
    %v923 = vsel %vm891, %v602, 0.0
    %v924 = vsel %vm892, %v604, 0.0
    %v925 = vsel %vm893, %v608, 0.0
    %v926 = vsel %vm894, %v610, 0.0
    %v927 = vsel %vm895, %v614, 0.0
    %v928 = vsel %vm896, %v616, 0.0
    %v929 = vsel %vm897, %v620, 0.0
    %v930 = vsel %vm898, %v622, 0.0
    %v931 = vsel %vm899, %v626, 0.0
    %v932 = vsel %vm900, %v628, 0.0
    %v933 = vsel %vm901, %v632, 0.0
    %v934 = vsel %vm902, %v634, 0.0
    %v935 = vsel %vm903, %v638, 0.0
    %v936 = vsel %vm904, %v640, 0.0
    %v937 = vsel %vm905, %v644, 0.0
    %v938 = vsel %vm906, %v646, 0.0
    %v939 = vsel %vm907, %v650, 0.0
    %v940 = vsel %vm908, %v652, 0.0
    %v941 = vsel %vm909, %v656, 0.0
    %v942 = vsel %vm910, %v658, 0.0
    %v943 = vsel %vm911, %v662, 0.0
    %v944 = vsel %vm912, %v664, 0.0
    %v945 = vsel %vm913, %v668, 0.0
    %v946 = vsel %vm914, %v670, 0.0
    %v947 = vsel %vm915, %v674, 0.0
    %v948 = vsel %vm916, %v676, 0.0
    %v949 = vsel %vm917, %v680, 0.0
    %v950 = vsel %vm918, %v682, 0.0
    %v951 = vsel %vm919, %v686, 0.0
    %v952 = vsel %vm920, %v688, 0.0
    %v953 = vsel %vm921, %v692, 0.0
    %v954 = vsel %vm922, %v694, 0.0
    %v955 = vadd.f32 %v923, %v925
    %v956 = vadd.f32 %v955, %v927
    %v957 = vadd.f32 %v956, %v929
    %v958 = vadd.f32 %v957, %v931
    %v959 = vadd.f32 %v958, %v933
    %v960 = vadd.f32 %v959, %v935
    %v961 = vadd.f32 %v960, %v937
    %v962 = vadd.f32 %v961, %v939
    %v963 = vadd.f32 %v962, %v941
    %v964 = vadd.f32 %v963, %v943
    %v965 = vadd.f32 %v964, %v945
    %v966 = vadd.f32 %v965, %v947
    %v967 = vadd.f32 %v966, %v949
    %v968 = vadd.f32 %v967, %v951
    %v969 = vadd.f32 %v968, %v953
    %v970 = vrot.slane %v969, 4
    %v971 = vadd.f32 %v969, %v970
    %v972 = vrot.slane %v971, 2
    %v973 = vadd.f32 %v971, %v972
    %v974 = vrot.slane %v973, 1
    %v975 = vadd.f32 %v973, %v974
    %v976 = vadd.f32 %v924, %v926
    %v977 = vadd.f32 %v976, %v928
    %v978 = vadd.f32 %v977, %v930
    %v979 = vadd.f32 %v978, %v932
    %v980 = vadd.f32 %v979, %v934
    %v981 = vadd.f32 %v980, %v936
    %v982 = vadd.f32 %v981, %v938
    %v983 = vadd.f32 %v982, %v940
    %v984 = vadd.f32 %v983, %v942
    %v985 = vadd.f32 %v984, %v944
    %v986 = vadd.f32 %v985, %v946
    %v987 = vadd.f32 %v986, %v948
    %v988 = vadd.f32 %v987, %v950
    %v989 = vadd.f32 %v988, %v952
    %v990 = vadd.f32 %v989, %v954
    %v991 = vrot.slane %v990, 4
    %v992 = vadd.f32 %v990, %v991
    %v993 = vrot.slane %v992, 2
    %v994 = vadd.f32 %v992, %v993
    %v995 = vrot.slane %v994, 1
    %v996 = vadd.f32 %v994, %v995
    %v997 = vsub.f32 %v881, %v975
    %v998 = vsub.f32 %v882, %v996
    %v999 = vlaneseq
    %v1000 = vand.u32 %v999, 127
    %v1001 = vadd.s32 %v1000, 128
    %s1002 = smul.u32 0, 256
    %v1003 = vstv %s1002
    %v1004 = vadd.s32 %v1000, %v1003
    %v1005 = vadd.s32 %v1001, %v1003
    %vm1006 = vcmp.lt.s32.totalorder %v1004, 16
    %vm1007 = vcmp.lt.s32.totalorder %v1005, 16
    %v1008 = vsel %vm1006, %v997, 0.0
    %v1009 = vsel %vm1007, %v998, 0.0
    %vm1010 = vcmask 1040384
    %v1011 = vsel %vm1010, %v1008, 0.0
    %v1012 = vsel %vm1010, %v1009, 0.0
    %v1013 = vadd.f32 %v1011, %v1012
    %1014 = vadd.xlane.f32.xlu0 %v1013
    %v1015 = vpop.xlane.xlu0 %1014
    %v1016 = vrot.slane %v1015, 4
    %v1017 = vadd.f32 %v1015, %v1016
    %v1018 = vrot.slane %v1017, 2
    %v1019 = vadd.f32 %v1017, %v1018
    %v1020 = vrot.slane %v1019, 1
    %v1021 = vadd.f32 %v1019, %v1020
    %s1022 = vtos %v1021
    %v1023 = vstv %s1022
    %v1024 = vadd.f32 %v1023, 0.0
    %1025 = vst [vmem:[#allocation8] sm:$0x1] %v1024
    // Predicated region
    $region22: #{tpu_custom_call.1} parent=1 // pred_check
      _
    $region23: #{tpu_custom_call.1} parent=1 // pred_check_branch
      %1027 = sbr.rel (0) target = $region25
    $region24: #{tpu_custom_call.1} parent=1 // pred_region
      %s1029 = ssub.s32 4096, 4096
      %1030 = vsyncadd [#allocation4], %s1029
      %s1031 = sshll.u32 [#allocation7], 4
      %s1032 = int_to_ptr.vmem [resolvable:$true] %s1031
      %1037 = dma.vmem_to_hbm [thread:$0]  %s1032, 4096, %s3, [#allocation4], 128, 128, 8
    $region25: #{tpu_custom_call.1} parent=1 // pred_fallthru
      _
    // Predicated region
    $region26: #{tpu_custom_call.1} parent=1 // pred_check
      _
    $region27: #{tpu_custom_call.1} parent=1 // pred_check_branch
      %1039 = sbr.rel (0) target = $region29
    $region28: #{tpu_custom_call.1} parent=1 // pred_region
      %s1041 = ssub.s32 16, 16
      %1042 = vsyncadd [#allocation9], %s1041
      %s1044 = sshll.u32 [#allocation8], 4
      %s1045 = int_to_ptr.vmem [resolvable:$true] %s1044
      %1047 = dma.vmem_to_hbm [thread:$0]  %s1045, 16, %s4, [#allocation9]
    $region29: #{tpu_custom_call.1} parent=1 // pred_fallthru
      _
    // Predicated region
    $region30: #{tpu_custom_call.1} parent=1 // pred_check
      _
    $region31: #{tpu_custom_call.1} parent=1 // pred_check_branch
      %1049 = sbr.rel (0) target = $region33
    $region32: #{tpu_custom_call.1} parent=1 // pred_region
      %1050 = dma.done [#allocation4], 4096
    $region33: #{tpu_custom_call.1} parent=1 // pred_fallthru
      _
    // Predicated region
    $region34: #{tpu_custom_call.1} parent=1 // pred_check
      _
    $region35: #{tpu_custom_call.1} parent=1 // pred_check_branch
      %1052 = sbr.rel (0) target = $region37
    $region36: #{tpu_custom_call.1} parent=1 // pred_region
      %1053 = dma.done [#allocation9], 16
    $region37: #{tpu_custom_call.1} parent=1 // pred_fallthru
      _
    %1054 = vsyncpa [#allocation3], 1
    %1055 = vsyncpa [#allocation6], 1
    %1056 = vsyncpa [#allocation4], 1
    %1057 = vsyncpa [#allocation9], 1

</llo_original>
